<compile_context>
chip_gen: v5e
topology: v5e:2x2
jax: 0.10.0
libtpu: 0.0.40
codegen_flags: <defaults>
</compile_context>

<pallas_src>
import jax
import jax.numpy as jnp
from jax.experimental import pallas as pl
from jax.experimental.pallas import tpu as pltpu

_LANE = 128
_COLS = 512                            # lane-dense last dim (multiple of 128)
_TARGET_BLOCK_BYTES = 2 * 1024 * 1024  # ~2 MiB per buffer per block
_MIN_PALLAS_ELEMENTS = 8192            # below this, plain JAX is strictly faster


def _min_sublanes(dtype):
    """Minimum sublane tile for a dtype (8 for 4B, 16 for 2B, 32 for 1B)."""
    itemsize = max(1, jnp.dtype(dtype).itemsize)
    return max(8, 32 // itemsize)


def _round_up(n, m):
    return ((n + m - 1) // m) * m


def _make_lambda_kernel(function, out_dtype):
    def kernel(x_ref, o_ref):
        o_ref[...] = function(x_ref[...]).astype(out_dtype)
    return kernel


def lambda_layer_forward(x, function, *, force_pallas=False):
    """Pallas implementation of LambdaLayer.forward for elementwise `function`."""
    total = int(x.size)
    if total == 0:
        return function(x)

    # Elementwise-only guard: the kernel applies `function` on flattened,
    # padded tiles, which is only valid for shape-preserving, axis-independent
    # callables.  Anything else falls back to plain (fused XLA) JAX.
    out_aval = jax.eval_shape(function, jax.ShapeDtypeStruct(x.shape, x.dtype))
    if out_aval.shape != x.shape:
        # TODO(synk): non-elementwise lambdas have no generic single-kernel
        # Pallas lowering; apply them as a plain fused XLA op instead.
        return function(x)
    out_dtype = out_aval.dtype

    # Tiny tensors: kernel launch + one grid step costs far more than the
    # data movement; a fused XLA elementwise op is strictly faster.
    if total < _MIN_PALLAS_ELEMENTS and not force_pallas:
        return function(x)

    orig_shape = x.shape
    min_rows = max(_min_sublanes(x.dtype), _min_sublanes(out_dtype))
    itemsize = max(jnp.dtype(x.dtype).itemsize, jnp.dtype(out_dtype).itemsize)

    # Flatten to a lane-dense 2-D slab, padded to whole (min_rows, _COLS)
    # units so the last two dims respect the (sublane, 128) tiling.
    unit = min_rows * _COLS
    padded_total = _round_up(total, unit)
    flat = x.reshape(-1)
    if padded_total != total:
        flat = jnp.pad(flat, (0, padded_total - total))
    rows = padded_total // _COLS
    x2d = flat.reshape(rows, _COLS)

    # ~2 MiB blocks per buffer; with in+out double buffering that is ~8 MiB
    # of VMEM, safely under every generation's scoped default (incl. v7x's
    # 32 MiB scoped / 64 MiB physical).
    target_rows = max(
        min_rows,
        (_TARGET_BLOCK_BYTES // (_COLS * itemsize)) // min_rows * min_rows,
    )
    block_rows = min(target_rows, rows)
    # If everything fits in one block but there's enough work, split into two
    # blocks so the 'parallel' grid axis can feed both v7x TensorCores.
    if block_rows >= rows and rows >= 2 * min_rows:
        block_rows = _round_up(pl.cdiv(rows, 2), min_rows)
    num_blocks = pl.cdiv(rows, block_rows)

    kernel = _make_lambda_kernel(function, out_dtype)

    out2d = pl.pallas_call(
        kernel,
        out_shape=jax.ShapeDtypeStruct((rows, _COLS), out_dtype),
        grid=(num_blocks,),
        in_specs=[pl.BlockSpec((block_rows, _COLS), lambda i: (i, 0))],
        out_specs=pl.BlockSpec((block_rows, _COLS), lambda i: (i, 0)),
        compiler_params=pltpu.CompilerParams(
            dimension_semantics=("parallel",),
        ),
    )(x2d)

    out_flat = out2d.reshape(-1)
    if padded_total != total:
        out_flat = out_flat[:total]
    return out_flat.reshape(orig_shape)


class LambdaLayerPallas:
    """Mirror of the PyTorch LambdaLayer module (no parameters)."""

    def __init__(self, function, *, force_pallas=False):
        self.function = function
        self.force_pallas = force_pallas

    def __call__(self, x):
        return lambda_layer_forward(x, self.function,
                                    force_pallas=self.force_pallas)


if __name__ == "__main__":
    # Concrete lambda used to instantiate the layer (deterministic, no params).
    fn = lambda t: jnp.maximum(t, 0.0) * 2.0 + 1.0

    # force_pallas so the (tiny) test shapes actually exercise the kernel path.
    layer = LambdaLayerPallas(fn, force_pallas=True)

    key = jax.random.PRNGKey(0)
    k0, k1, k2 = jax.random.split(key, 3)

    # Primary NCHW input: batch=2, channels=4, spatial=16x16.
    x = jax.random.normal(k0, (2, 4, 16, 16), dtype=jnp.float32)
    y = jax.block_until_ready(layer(x))
    assert y.shape == x.shape and y.dtype == x.dtype
    assert jnp.allclose(y, fn(x), atol=1e-6), "mismatch vs reference (primary)"

    # Ragged (non-multiple-of-128) shape exercises the padding path.
    x2 = jax.random.normal(k1, (2, 3, 7, 5), dtype=jnp.float32)
    y2 = jax.block_until_ready(layer(x2))
    assert jnp.allclose(y2, fn(x2), atol=1e-6), "mismatch vs reference (ragged)"

    # Slightly larger input exercises the multi-block (grid >= 2) tiled path.
    x3 = jax.random.normal(k2, (4, 8, 32, 32), dtype=jnp.float32)
    y3 = jax.block_until_ready(layer(x3))
    assert jnp.allclose(y3, fn(x3), atol=1e-6), "mismatch vs reference (tiled)"

    print("KERNEL_OK")
</pallas_src>

<mosaic_0001>
module attributes {stable_mosaic.version = 11 : i64} {
  func.func @kernel(%arg0: i32, %arg1: memref<8x512xf32, #tpu.memory_space<vmem>>, %arg2: memref<8x512xf32, #tpu.memory_space<vmem>>) attributes {dimension_semantics = [#tpu.dimension_semantics<parallel>], iteration_bounds = array<i64: 1>, scalar_prefetch = 0 : i64, scratch_operands = 0 : i64, tpu.core_type = #tpu.core_type<tc>, window_params = [{transform_indices = @transform_0, window_bounds = array<i64: 8, 512>}, {transform_indices = @transform_1, window_bounds = array<i64: 8, 512>}]} {
    %c0 = arith.constant 0 : index
    %c0_0 = arith.constant 0 : index
    %0 = vector.load %arg1[%c0, %c0_0] : memref<8x512xf32, #tpu.memory_space<vmem>>, vector<8x512xf32>
    %cst = arith.constant 0.000000e+00 : f32
    %1 = vector.broadcast %cst : f32 to vector<8x512xf32>
    %2 = arith.maximumf %0, %1 : vector<8x512xf32>
    %cst_1 = arith.constant 2.000000e+00 : f32
    %3 = vector.broadcast %cst_1 : f32 to vector<8x512xf32>
    %4 = arith.mulf %2, %3 : vector<8x512xf32>
    %cst_2 = arith.constant 1.000000e+00 : f32
    %5 = vector.broadcast %cst_2 : f32 to vector<8x512xf32>
    %6 = arith.addf %4, %5 : vector<8x512xf32>
    %c0_3 = arith.constant 0 : index
    %c0_4 = arith.constant 0 : index
    %7 = vector.load %arg2[%c0_3, %c0_4] : memref<8x512xf32, #tpu.memory_space<vmem>>, vector<8x512xf32>
    tpu.vector_store %arg2[%c0_3, %c0_4], %6 {strides = array<i32>} : memref<8x512xf32, #tpu.memory_space<vmem>>, vector<8x512xf32>,
    return
  }
  func.func @transform_0(%arg0: i32) -> (i32, i32) {
    %c0_i32 = arith.constant 0 : i32
    %c0_i32_0 = arith.constant 0 : i32
    return %arg0, %c0_i32 : i32, i32
  }
  func.func @transform_1(%arg0: i32) -> (i32, i32) {
    %c0_i32 = arith.constant 0 : i32
    %c0_i32_0 = arith.constant 0 : i32
    return %arg0, %c0_i32 : i32, i32
  }
}

</mosaic_0001>

<llo_original>
// kernel: tpu_custom_call.1
$region0: #{tpu_custom_call.1}
  #allocation0 [shape = 'u32[]', space=smem, size = 0x4, offset = 0x4, fixed_abs, tag = 'smem constant byte address 0x4 - core index']
  #allocation1 [shape = 'u32[72,128]{1,0:T(1,128)}', space=vmem, size = 0x9000, scoped, tag = 'internal scratch']
  %s0 = inlined_call_operand.hbm [shape: f32[8,512], index: 0, kind: input, shape index: {}]
  %s1 = inlined_call_operand.hbm [shape: f32[8,512], index: 1, kind: output, shape index: {}]
  %s2 = sld [smem:[#allocation0]]
  $region18: #{tpu_custom_call.1} parent=0
    _
  %s4 = ssub.s32 1, %s2
  %s5 = scalar_select 0, %s4, %s2
  $region1: #{tpu_custom_call.1} parent=0
    #allocation2 [shape = 'u8[16384]{0}', space=vmem, size = 0x4000, scoped, tag = 'input window, operand 0, single buffered']
    #allocation3 [shape = 's32[1]{0}', space=sflag, size = 0x4, scoped, tag = 'scoped memory for tpu_custom_call.1']
    #allocation4 [shape = 's32[1]{0}', space=sflag, size = 0x4, scoped, tag = 'scoped memory for tpu_custom_call.1']
    #allocation5 [shape = 'u8[16384]{0}', space=vmem, size = 0x4000, scoped, tag = 'output window, operand 0, single buffered']
    %6 = vsyncpa [#allocation3], 0
    %7 = vsyncpa [#allocation4], 0
    // Predicated region
    $region2: #{tpu_custom_call.1} parent=1 // pred_check
      _
    $region3: #{tpu_custom_call.1} parent=1 // pred_check_branch
      %9 = sbr.rel (0) target = $region5
    $region4: #{tpu_custom_call.1} parent=1 // pred_region
      %11 = vsyncadd [#allocation3], 0
      %s13 = sshll.u32 %s0, 4
      %s14 = int_to_ptr.hbm [resolvable:$true] %s13
      %s15 = sshll.u32 [#allocation2], 4
      %s16 = int_to_ptr.vmem [resolvable:$true] %s15
      %18 = dma.hbm_to_vmem [thread:$0]  %s14, 512, %s16, [#allocation3]
    $region5: #{tpu_custom_call.1} parent=1 // pred_fallthru
      _
    // Predicated region
    $region6: #{tpu_custom_call.1} parent=1 // pred_check
      _
    $region7: #{tpu_custom_call.1} parent=1 // pred_check_branch
      %20 = sbr.rel (0) target = $region9
    $region8: #{tpu_custom_call.1} parent=1 // pred_region
      %22 = dma.done [#allocation3], 512
    $region9: #{tpu_custom_call.1} parent=1 // pred_fallthru
      _
    %v23 = vld [vmem:[#allocation2] sm:$0xff]
    %v24 = vld [vmem:[#allocation2 + $0x8] sm:$0xff]
    %v25 = vld [vmem:[#allocation2 + $0x10] sm:$0xff]
    %v26 = vld [vmem:[#allocation2 + $0x18] sm:$0xff]
    %v27 = vmax.f32 %v23, 0.0
    %v28 = vmax.f32 %v24, 0.0
    %v29 = vmax.f32 %v25, 0.0
    %v30 = vmax.f32 %v26, 0.0
    %v31 = vmul.f32 %v27, 2.0
    %v32 = vmul.f32 %v28, 2.0
    %v33 = vmul.f32 %v29, 2.0
    %v34 = vmul.f32 %v30, 2.0
    %v35 = vadd.f32 %v31, 1.0
    %v36 = vadd.f32 %v32, 1.0
    %v37 = vadd.f32 %v33, 1.0
    %v38 = vadd.f32 %v34, 1.0
    %39 = vst [vmem:[#allocation5] sm:$0xff] %v35
    %40 = vst [vmem:[#allocation5 + $0x8] sm:$0xff] %v36
    %41 = vst [vmem:[#allocation5 + $0x10] sm:$0xff] %v37
    %42 = vst [vmem:[#allocation5 + $0x18] sm:$0xff] %v38
    // Predicated region
    $region10: #{tpu_custom_call.1} parent=1 // pred_check
      _
    $region11: #{tpu_custom_call.1} parent=1 // pred_check_branch
      %44 = sbr.rel (0) target = $region13
    $region12: #{tpu_custom_call.1} parent=1 // pred_region
      %46 = vsyncadd [#allocation4], 0
      %s48 = sshll.u32 [#allocation5], 4
      %s49 = int_to_ptr.vmem [resolvable:$true] %s48
      %s50 = sshll.u32 %s1, 4
      %s51 = int_to_ptr.hbm [resolvable:$true] %s50
      %53 = dma.vmem_to_hbm [thread:$0]  %s49, 512, %s51, [#allocation4]
    $region13: #{tpu_custom_call.1} parent=1 // pred_fallthru
      _
    // Predicated region
    $region14: #{tpu_custom_call.1} parent=1 // pred_check
      _
    $region15: #{tpu_custom_call.1} parent=1 // pred_check_branch
      %55 = sbr.rel (0) target = $region17
    $region16: #{tpu_custom_call.1} parent=1 // pred_region
      %57 = dma.done [#allocation4], 512
    $region17: #{tpu_custom_call.1} parent=1 // pred_fallthru
      _
    %58 = vsyncpa [#allocation3], 1
    %59 = vsyncpa [#allocation4], 1

</llo_original>
